<compile_context>
chip_gen: v7x
topology: tpu7x:2x2x1
jax: 0.10.0
libtpu: 0.0.40
codegen_flags: <defaults>
</compile_context>

<pallas_src>
import functools

import jax
import jax.numpy as jnp
import numpy as np
from jax.experimental import pallas as pl
from jax.experimental.pallas import tpu as pltpu

_LANE = 128


def _ode_euler_kernel(params_ref, a_ref, x_ref, x0_ref, out_ref, *, n_steps, unroll):
    """Whole ODE integration for one feature-column block.

    params_ref : SMEM (1,) f32      -> [c2 = step * beta_train]
    a_ref      : VMEM (N, N)        folded Euler operator  c1*A + (1-c1)*I  (f32 or bf16)
    x_ref      : VMEM (N, Dblk) f32 initial state block
    x0_ref     : VMEM (N, Dblk) f32 source-term block
    out_ref    : VMEM (N, Dblk) f32 state at t = T
    """
    c2 = params_ref[0]

    a = a_ref[...]                      # single VMEM-resident copy, loop-invariant
    src = c2 * x0_ref[...]              # loop-invariant per block (kept in-kernel, not pre-scaled)
    state0 = x_ref[...]

    def body(_, state):
        # Per step: one MXU matmul (f32 accumulate) + one VPU add; state carried in f32.
        return jnp.dot(a, state.astype(a.dtype),
                       preferred_element_type=jnp.float32) + src

    state = jax.lax.fori_loop(0, n_steps, body, state0, unroll=unroll)
    out_ref[...] = state.astype(out_ref.dtype)


def constant_ode_block_forward(x, x0, adj, alpha_train, beta_train,
                               *, time=4.0, step_size=1.0, mxu_dtype=jnp.float32):
    """Pallas implementation of ConstantODEblock1.forward (fixed-step euler, step_size=1)."""
    N, D = x.shape
    n_steps = int(round(float(time) / float(step_size)))
    # torchdiffeq's fixed-grid euler lands exactly on t=T; only support exact multiples here.
    assert abs(n_steps * float(step_size) - float(time)) < 1e-6, \
        "time must be an integer multiple of step_size for this fixed-grid Euler kernel"

    # Lane-dense padding of the feature dimension (last dim -> multiple of 128).
    d_pad = max(_LANE, pl.cdiv(D, _LANE) * _LANE)
    pad = d_pad - D
    x_p = jnp.pad(x.astype(jnp.float32), ((0, 0), (0, pad)))
    x0_p = jnp.pad(x0.astype(jnp.float32), ((0, 0), (0, pad)))

    # Scalar parameter transform (stable sigmoid), done once outside the step loop.
    c1 = jnp.float32(step_size) * jax.nn.sigmoid(jnp.asarray(alpha_train, jnp.float32))
    c2 = jnp.float32(step_size) * jnp.asarray(beta_train, jnp.float32)

    # Hoisted fold of the Euler update (built ONCE, not per grid step / per Euler step):
    #   state_{k+1} = state + step*(alpha*(A@state - state) + beta*x0)
    #               = (c1*A + (1-c1)*I) @ state + c2*x0
    a_eff = c1 * adj.astype(jnp.float32) + (1.0 - c1) * jnp.eye(N, dtype=jnp.float32)
    a_eff = a_eff.astype(mxu_dtype)     # bf16 on v6e/v7x halves operator VMEM/HBM bytes

    params = jnp.reshape(c2, (1,)).astype(jnp.float32)

    grid = (d_pad // _LANE,)  # independent per feature-column block; "parallel" for megacore

    # VMEM budget: single-buffered operator + double-buffered x/x0/out blocks + temps + slack.
    blk_bytes = N * _LANE * 4
    a_bytes = N * N * jnp.dtype(mxu_dtype).itemsize
    vmem_needed = a_bytes + 6 * blk_bytes + 4 * blk_bytes + (2 << 20)
    vmem_limit = int(min(max(vmem_needed, 32 << 20), 100 << 20))

    flops = 2 * n_steps * N * N * d_pad
    bytes_accessed = a_bytes + 3 * N * d_pad * 4 + params.size * 4

    kernel = functools.partial(_ode_euler_kernel, n_steps=n_steps, unroll=(n_steps <= 8))

    z_p = pl.pallas_call(
        kernel,
        out_shape=jax.ShapeDtypeStruct((N, d_pad), jnp.float32),
        grid=grid,
        in_specs=[
            pl.BlockSpec(memory_space=pltpu.MemorySpace.SMEM),   # c2 scalar
            # Constant-index operator: whole-array VMEM residency -> exactly one copy in VMEM
            # (the single-buffering the review asked for; no redundant per-step DMA either).
            pl.BlockSpec(memory_space=pltpu.MemorySpace.VMEM),
            pl.BlockSpec((N, _LANE), lambda j: (0, j)),          # x block
            pl.BlockSpec((N, _LANE), lambda j: (0, j)),          # x0 block
        ],
        out_specs=pl.BlockSpec((N, _LANE), lambda j: (0, j)),
        compiler_params=pltpu.CompilerParams(
            dimension_semantics=("parallel",),
            vmem_limit_bytes=vmem_limit),
        cost_estimate=pl.CostEstimate(flops=flops,
                                      transcendentals=0,
                                      bytes_accessed=int(bytes_accessed)),
    )(params, a_eff, x_p, x0_p)

    return z_p[:, :D].astype(x.dtype)


def _reference_forward(x, x0, adj, alpha_train, beta_train, *, time=4.0, step_size=1.0):
    """Pure-JAX reference (explicit Euler, direct translation of LaplacianODEFunc)."""
    alpha = jax.nn.sigmoid(jnp.asarray(alpha_train, jnp.float32))
    beta = jnp.asarray(beta_train, jnp.float32)
    n_steps = int(round(float(time) / float(step_size)))
    state = x.astype(jnp.float32)
    for _ in range(n_steps):
        f = alpha * (adj @ state - state) + beta * x0
        state = state + step_size * f
    return state.astype(x.dtype)


if __name__ == "__main__":
    key = jax.random.PRNGKey(0)
    k_x, k_a = jax.random.split(key)

    N, D = 64, 32          # nodes, hidden features
    TIME = 4.0             # args.time
    STEP = 1.0             # options: step_size=1 (euler)

    x = jax.random.normal(k_x, (N, D), dtype=jnp.float32)
    x0 = x                                               # set_x0(x): x0 = x.clone().detach()

    # Deterministic synthetic row-normalized dense adjacency.
    a_raw = jax.random.uniform(k_a, (N, N), dtype=jnp.float32)
    adj = a_raw / jnp.sum(a_raw, axis=1, keepdims=True)

    # Module __init__ parameter initialization (nn.Parameter(torch.tensor(0.0))).
    alpha_train = 0.0
    beta_train = 0.0

    z_ref = _reference_forward(x, x0, adj, alpha_train, beta_train,
                               time=TIME, step_size=STEP)

    # f32 MXU operands (exact path).
    z = constant_ode_block_forward(x, x0, adj, alpha_train, beta_train,
                                   time=TIME, step_size=STEP)
    z = jax.block_until_ready(z)
    np.testing.assert_allclose(np.asarray(z), np.asarray(z_ref), rtol=1e-5, atol=1e-5)

    # bf16 MXU operands (v6e/v7x fast path), f32 accumulation + f32 carried state.
    z_bf = constant_ode_block_forward(x, x0, adj, alpha_train, beta_train,
                                      time=TIME, step_size=STEP, mxu_dtype=jnp.bfloat16)
    z_bf = jax.block_until_ready(z_bf)
    np.testing.assert_allclose(np.asarray(z_bf), np.asarray(z_ref), rtol=0.0, atol=5e-2)

    print("KERNEL_OK")
</pallas_src>

<mosaic_0001>
module attributes {stable_mosaic.version = 11 : i64} {
  func.func @_ode_euler_kernel(%arg0: i32, %arg1: memref<1xf32, #tpu.memory_space<smem>>, %arg2: memref<64x64xf32, #tpu.memory_space<vmem>>, %arg3: memref<64x128xf32, #tpu.memory_space<vmem>>, %arg4: memref<64x128xf32, #tpu.memory_space<vmem>>, %arg5: memref<64x128xf32, #tpu.memory_space<vmem>>) attributes {dimension_semantics = [#tpu.dimension_semantics<parallel>], iteration_bounds = array<i64: 1>, scalar_prefetch = 0 : i64, scratch_operands = 0 : i64, tpu.core_type = #tpu.core_type<tc>, window_params = [{transform_indices = @transform_0, window_bounds = array<i64: 1>}, {pipeline_mode = #tpu.pipeline_mode<synchronous>, transform_indices = @transform_1, window_bounds = array<i64: 64, 64>}, {transform_indices = @transform_2, window_bounds = array<i64: 64, 128>}, {transform_indices = @transform_3, window_bounds = array<i64: 64, 128>}, {transform_indices = @transform_4, window_bounds = array<i64: 64, 128>}]} {
    %c0 = arith.constant 0 : index
    %0 = memref.load %arg1[%c0] : memref<1xf32, #tpu.memory_space<smem>>
    %c0_0 = arith.constant 0 : index
    %c0_1 = arith.constant 0 : index
    %1 = vector.load %arg2[%c0_0, %c0_1] : memref<64x64xf32, #tpu.memory_space<vmem>>, vector<64x64xf32>
    %c0_2 = arith.constant 0 : index
    %c0_3 = arith.constant 0 : index
    %2 = vector.load %arg4[%c0_2, %c0_3] : memref<64x128xf32, #tpu.memory_space<vmem>>, vector<64x128xf32>
    %3 = vector.broadcast %0 : f32 to vector<64x128xf32>
    %4 = arith.mulf %3, %2 : vector<64x128xf32>
    %c0_4 = arith.constant 0 : index
    %c0_5 = arith.constant 0 : index
    %5 = vector.load %arg3[%c0_4, %c0_5] : memref<64x128xf32, #tpu.memory_space<vmem>>, vector<64x128xf32>
    %c0_i32 = arith.constant 0 : i32
    %cst = arith.constant dense<0.000000e+00> : vector<64x128xf32>
    %6 = tpu.matmul %1, %5, %cst {dimension_numbers = #tpu.dot_dimension_numbers<[1], [0], [0], [1], [0, 0, 1, 1], [], []>} : vector<64x64xf32>, vector<64x128xf32>, vector<64x128xf32> -> vector<64x128xf32>
    %7 = arith.addf %6, %4 : vector<64x128xf32>
    %c1_i32 = arith.constant 1 : i32
    %cst_6 = arith.constant dense<0.000000e+00> : vector<64x128xf32>
    %8 = tpu.matmul %1, %7, %cst_6 {dimension_numbers = #tpu.dot_dimension_numbers<[1], [0], [0], [1], [0, 0, 1, 1], [], []>} : vector<64x64xf32>, vector<64x128xf32>, vector<64x128xf32> -> vector<64x128xf32>
    %9 = arith.addf %8, %4 : vector<64x128xf32>
    %c2_i32 = arith.constant 2 : i32
    %cst_7 = arith.constant dense<0.000000e+00> : vector<64x128xf32>
    %10 = tpu.matmul %1, %9, %cst_7 {dimension_numbers = #tpu.dot_dimension_numbers<[1], [0], [0], [1], [0, 0, 1, 1], [], []>} : vector<64x64xf32>, vector<64x128xf32>, vector<64x128xf32> -> vector<64x128xf32>
    %11 = arith.addf %10, %4 : vector<64x128xf32>
    %c3_i32 = arith.constant 3 : i32
    %cst_8 = arith.constant dense<0.000000e+00> : vector<64x128xf32>
    %12 = tpu.matmul %1, %11, %cst_8 {dimension_numbers = #tpu.dot_dimension_numbers<[1], [0], [0], [1], [0, 0, 1, 1], [], []>} : vector<64x64xf32>, vector<64x128xf32>, vector<64x128xf32> -> vector<64x128xf32>
    %13 = arith.addf %12, %4 : vector<64x128xf32>
    %c0_9 = arith.constant 0 : index
    %c0_10 = arith.constant 0 : index
    %14 = vector.load %arg5[%c0_9, %c0_10] : memref<64x128xf32, #tpu.memory_space<vmem>>, vector<64x128xf32>
    tpu.vector_store %arg5[%c0_9, %c0_10], %13 {strides = array<i32>} : memref<64x128xf32, #tpu.memory_space<vmem>>, vector<64x128xf32>,
    return
  }
  func.func @transform_0(%arg0: i32) -> i32 {
    %c0_i32 = arith.constant 0 : i32
    %c0_i32_0 = arith.constant 0 : i32
    return %c0_i32 : i32
  }
  func.func @transform_1(%arg0: i32) -> (i32, i32) {
    %c0_i32 = arith.constant 0 : i32
    %c0_i32_0 = arith.constant 0 : i32
    %c0_i32_1 = arith.constant 0 : i32
    return %c0_i32, %c0_i32_0 : i32, i32
  }
  func.func @transform_2(%arg0: i32) -> (i32, i32) {
    %c0_i32 = arith.constant 0 : i32
    %c0_i32_0 = arith.constant 0 : i32
    return %c0_i32, %arg0 : i32, i32
  }
  func.func @transform_3(%arg0: i32) -> (i32, i32) {
    %c0_i32 = arith.constant 0 : i32
    %c0_i32_0 = arith.constant 0 : i32
    return %c0_i32, %arg0 : i32, i32
  }
  func.func @transform_4(%arg0: i32) -> (i32, i32) {
    %c0_i32 = arith.constant 0 : i32
    %c0_i32_0 = arith.constant 0 : i32
    return %c0_i32, %arg0 : i32, i32
  }
}

</mosaic_0001>

<llo_original>
// kernel: tpu_custom_call.1
$region0: #{tpu_custom_call.1}
  #allocation0 [shape = 'u32[]', space=smem, size = 0x4, offset = 0x4, fixed_abs, tag = 'smem constant byte address 0x4 - core index']
  #allocation1 [shape = 'u32[144,128]{1,0:T(1,128)}', space=vmem, size = 0x12000, scoped, tag = 'internal scratch']
  #allocation2 [shape = 'f32[1]{0:T(128)S(6)}', space=smem, size = 0x200, scoped, tag = 'scoped memory for tpu_custom_call.1']
  %s0 = inlined_call_operand.<no memory space> [shape: f32[1], index: 0, kind: input, shape index: {}]
  %s1 = inlined_call_operand.hbm [shape: f32[64,64], index: 1, kind: input, shape index: {}]
  %s2 = inlined_call_operand.hbm [shape: f32[64,128], index: 2, kind: input, shape index: {}]
  %s3 = inlined_call_operand.hbm [shape: f32[64,128], index: 3, kind: input, shape index: {}]
  %s4 = inlined_call_operand.hbm [shape: f32[64,128], index: 4, kind: output, shape index: {}]
  %s5 = sld [smem:[#allocation0]]
  $region38: #{tpu_custom_call.1} parent=0
    _
  %s7 = ssub.s32 1, %s5
  %s8 = scalar_select 0, %s7, %s5
  %9 = sst [smem:[#allocation2]] %s0
  $region1: #{tpu_custom_call.1} parent=0
    #allocation3 [shape = 'u8[32768]{0}', space=vmem, size = 0x8000, scoped, tag = 'input window, operand 1, single buffered']
    #allocation4 [shape = 's32[1]{0}', space=sflag, size = 0x4, scoped, tag = 'scoped memory for tpu_custom_call.1']
    #allocation5 [shape = 's32[1]{0}', space=sflag, size = 0x4, scoped, tag = 'scoped memory for tpu_custom_call.1']
    #allocation6 [shape = 'u8[32768]{0}', space=vmem, size = 0x8000, scoped, tag = 'input window, operand 2, single buffered']
    #allocation7 [shape = 's32[1]{0}', space=sflag, size = 0x4, scoped, tag = 'scoped memory for tpu_custom_call.1']
    #allocation8 [shape = 'u8[32768]{0}', space=vmem, size = 0x8000, scoped, tag = 'input window, operand 3, single buffered']
    #allocation9 [shape = 'u8[32768]{0}', space=vmem, size = 0x8000, scoped, tag = 'output window, operand 0, single buffered']
    %10 = vsyncpa [#allocation4], 0
    %11 = vsyncpa [#allocation7], 0
    %12 = vsyncpa [#allocation5], 0
    // Predicated region
    $region2: #{tpu_custom_call.1} parent=1 // pred_check
      _
    $region3: #{tpu_custom_call.1} parent=1 // pred_check_branch
      %14 = sbr.rel (0) target = $region5
    $region4: #{tpu_custom_call.1} parent=1 // pred_region
      _
    $region5: #{tpu_custom_call.1} parent=1 // pred_fallthru
      _
    // Predicated region
    $region6: #{tpu_custom_call.1} parent=1 // pred_check
      _
    $region7: #{tpu_custom_call.1} parent=1 // pred_check_branch
      %16 = sbr.rel (0) target = $region9
    $region8: #{tpu_custom_call.1} parent=1 // pred_region
      %s18 = ssub.s32 1024, 1024
      %19 = vsyncadd [#allocation4], %s18
      %s20 = sshll.u32 [#allocation3], 4
      %s21 = int_to_ptr.vmem [resolvable:$true] %s20
      %26 = dma.hbm_to_vmem [thread:$0]  %s1, 1024, %s21, [#allocation4], 128, 128, 8
    $region9: #{tpu_custom_call.1} parent=1 // pred_fallthru
      _
    // Predicated region
    $region10: #{tpu_custom_call.1} parent=1 // pred_check
      _
    $region11: #{tpu_custom_call.1} parent=1 // pred_check_branch
      %28 = sbr.rel (0) target = $region13
    $region12: #{tpu_custom_call.1} parent=1 // pred_region
      %s30 = ssub.s32 1024, 1024
      %31 = vsyncadd [#allocation7], %s30
      %s32 = sshll.u32 [#allocation6], 4
      %s33 = int_to_ptr.vmem [resolvable:$true] %s32
      %38 = dma.hbm_to_vmem [thread:$0]  %s2, 1024, %s33, [#allocation7], 128, 128, 8
    $region13: #{tpu_custom_call.1} parent=1 // pred_fallthru
      _
    // Predicated region
    $region14: #{tpu_custom_call.1} parent=1 // pred_check
      _
    $region15: #{tpu_custom_call.1} parent=1 // pred_check_branch
      %40 = sbr.rel (0) target = $region17
    $region16: #{tpu_custom_call.1} parent=1 // pred_region
      %s42 = ssub.s32 1024, 1024
      %43 = vsyncadd [#allocation7], %s42
      %s44 = sshll.u32 [#allocation8], 4
      %s45 = int_to_ptr.vmem [resolvable:$true] %s44
      %50 = dma.hbm_to_vmem [thread:$0]  %s3, 1024, %s45, [#allocation7], 128, 128, 8
    $region17: #{tpu_custom_call.1} parent=1 // pred_fallthru
      _
    // Predicated region
    $region18: #{tpu_custom_call.1} parent=1 // pred_check
      _
    $region19: #{tpu_custom_call.1} parent=1 // pred_check_branch
      %52 = sbr.rel (0) target = $region21
    $region20: #{tpu_custom_call.1} parent=1 // pred_region
      %53 = dma.done [#allocation4], 1024
    $region21: #{tpu_custom_call.1} parent=1 // pred_fallthru
      _
    // Predicated region
    $region22: #{tpu_custom_call.1} parent=1 // pred_check
      _
    $region23: #{tpu_custom_call.1} parent=1 // pred_check_branch
      %55 = sbr.rel (0) target = $region25
    $region24: #{tpu_custom_call.1} parent=1 // pred_region
      %56 = dma.done [#allocation7], 1024
    $region25: #{tpu_custom_call.1} parent=1 // pred_fallthru
      _
    // Predicated region
    $region26: #{tpu_custom_call.1} parent=1 // pred_check
      _
    $region27: #{tpu_custom_call.1} parent=1 // pred_check_branch
      %58 = sbr.rel (0) target = $region29
    $region28: #{tpu_custom_call.1} parent=1 // pred_region
      %59 = dma.done [#allocation7], 1024
    $region29: #{tpu_custom_call.1} parent=1 // pred_fallthru
      _
    %s60 = sld [smem:[#allocation2]]
    %v61 = vld [vmem:[#allocation3] sm:$0xff]
    %v62 = vld [vmem:[#allocation3 + $0x8] sm:$0xff]
    %v63 = vld [vmem:[#allocation3 + $0x10] sm:$0xff]
    %v64 = vld [vmem:[#allocation3 + $0x18] sm:$0xff]
    %v65 = vld [vmem:[#allocation3 + $0x20] sm:$0xff]
    %v66 = vld [vmem:[#allocation3 + $0x28] sm:$0xff]
    %v67 = vld [vmem:[#allocation3 + $0x30] sm:$0xff]
    %v68 = vld [vmem:[#allocation3 + $0x38] sm:$0xff]
    %v69 = vld [vmem:[#allocation8] sm:$0xff]
    %v70 = vld [vmem:[#allocation8 + $0x8] sm:$0xff]
    %v71 = vld [vmem:[#allocation8 + $0x10] sm:$0xff]
    %v72 = vld [vmem:[#allocation8 + $0x18] sm:$0xff]
    %v73 = vld [vmem:[#allocation8 + $0x20] sm:$0xff]
    %v74 = vld [vmem:[#allocation8 + $0x28] sm:$0xff]
    %v75 = vld [vmem:[#allocation8 + $0x30] sm:$0xff]
    %v76 = vld [vmem:[#allocation8 + $0x38] sm:$0xff]
    %v77 = vstv %s60
    %v78 = vmul.f32 %v77, %v69
    %v79 = vmul.f32 %v77, %v70
    %v80 = vmul.f32 %v77, %v71
    %v81 = vmul.f32 %v77, %v72
    %v82 = vmul.f32 %v77, %v73
    %v83 = vmul.f32 %v77, %v74
    %v84 = vmul.f32 %v77, %v75
    %v85 = vmul.f32 %v77, %v76
    %v86 = vld [vmem:[#allocation6] sm:$0xff]
    %v87 = vld [vmem:[#allocation6 + $0x8] sm:$0xff]
    %v88 = vld [vmem:[#allocation6 + $0x10] sm:$0xff]
    %v89 = vld [vmem:[#allocation6 + $0x18] sm:$0xff]
    %v90 = vld [vmem:[#allocation6 + $0x20] sm:$0xff]
    %v91 = vld [vmem:[#allocation6 + $0x28] sm:$0xff]
    %v92 = vld [vmem:[#allocation6 + $0x30] sm:$0xff]
    %v93 = vld [vmem:[#allocation6 + $0x38] sm:$0xff]
    %vm94 = vcmask 523264
    %v96 = vsel %vm94, %v61, 0
    %v99 = vsel %vm94, %v62, 0
    %v102 = vsel %vm94, %v63, 0
    %v105 = vsel %vm94, %v64, 0
    %v108 = vsel %vm94, %v65, 0
    %v111 = vsel %vm94, %v66, 0
    %v114 = vsel %vm94, %v67, 0
    %v117 = vsel %vm94, %v68, 0
    %119 = vmatprep.subr.mxu0 0.0
    %120 = vmatpush1.msra.mxu0 %v86
    %121 = vmatprep.subr.mxu0 0.0
    %122 = vmatpush1.msra.mxu0 %v87
    %123 = vmatprep.subr.mxu0 0.0
    %124 = vmatpush1.msra.mxu0 %v88
    %125 = vmatprep.subr.mxu0 0.0
    %126 = vmatpush1.msra.mxu0 %v89
    %127 = vmatprep.subr.mxu0 0.0
    %128 = vmatpush1.msra.mxu0 %v90
    %129 = vmatprep.subr.mxu0 0.0
    %130 = vmatpush1.msra.mxu0 %v91
    %131 = vmatprep.subr.mxu0 0.0
    %132 = vmatpush1.msra.mxu0 %v92
    %133 = vmatprep.subr.mxu0 0.0
    %134 = vmatpush1.msra.mxu0 %v93
    %135 = vmatprep.subr.mxu0 0.0
    %136 = vmatpush1.msra.mxu0 0.0
    %137 = vmatprep.subr.mxu0 0.0
    %138 = vmatpush1.msra.mxu0 0.0
    %139 = vmatprep.subr.mxu0 0.0
    %140 = vmatpush1.msra.mxu0 0.0
    %141 = vmatprep.subr.mxu0 0.0
    %142 = vmatpush1.msra.mxu0 0.0
    %143 = vmatprep.subr.mxu0 0.0
    %144 = vmatpush1.msra.mxu0 0.0
    %145 = vmatprep.subr.mxu0 0.0
    %146 = vmatpush1.msra.mxu0 0.0
    %147 = vmatprep.subr.mxu0 0.0
    %148 = vmatpush1.msra.mxu0 0.0
    %149 = vmatprep.subr.mxu0 0.0
    %150 = vmatpush1.msra.mxu0 0.0
    %151 = vmatprep.subr.mxu0 0.0
    %152 = vmatpush1.msra.mxu0 0.0
    %153 = vmatprep.subr.mxu0 0.0
    %154 = vmatpush1.msra.mxu0 0.0
    %155 = vmatprep.subr.mxu0 0.0
    %156 = vmatpush1.msra.mxu0 0.0
    %157 = vmatprep.subr.mxu0 0.0
    %158 = vmatpush1.msra.mxu0 0.0
    %159 = vmatprep.subr.mxu0 0.0
    %160 = vmatpush1.msra.mxu0 0.0
    %161 = vmatprep.subr.mxu0 0.0
    %162 = vmatpush1.msra.mxu0 0.0
    %163 = vmatprep.subr.mxu0 0.0
    %164 = vmatpush1.msra.mxu0 0.0
    %165 = vmatprep.subr.mxu0 0.0
    %166 = vmatpush1.msra.mxu0 0.0
    %167 = vmatprep.subr.mxu0 0.0
    %168 = vmatpush1.msra.mxu0 0.0
    %169 = vmatprep.subr.mxu0 0.0
    %170 = vmatpush1.msra.mxu0 0.0
    %171 = vmatprep.subr.mxu0 0.0
    %172 = vmatpush1.msra.mxu0 0.0
    %173 = vmatprep.subr.mxu0 0.0
    %174 = vmatpush1.msra.mxu0 0.0
    %175 = vmatprep.subr.mxu0 0.0
    %176 = vmatpush1.msra.mxu0 0.0
    %177 = vmatprep.subr.mxu0 0.0
    %178 = vmatpush1.msra.mxu0 0.0
    %179 = vmatprep.subr.mxu0 0.0
    %180 = vmatpush1.msra.mxu0 0.0
    %181 = vmatprep.subr.mxu0 0.0
    %182 = vmatpush1.msra.mxu0 0.0
    %183 = vmatprep.mubr.f32.mxu0 0.0
    %184 = vmatmul.mubr.f32.gmra.mrb[0].mxu0 %v96
    %v185 = vpop.f32.mrb[0].mxu0
    %v186 = vadd.f32 %v78, %v185
    %v187 = vpop.f32.mrb[0].mxu0
    %188 = vmatprep.mubr.f32.mxu0 0.0
    %189 = vmatmul.mubr.f32.gmra.mrb[0].mxu0 %v99
    %v190 = vpop.f32.mrb[0].mxu0
    %v191 = vadd.f32 %v79, %v190
    %v192 = vpop.f32.mrb[0].mxu0
    %193 = vmatprep.mubr.f32.mxu0 0.0
    %194 = vmatmul.mubr.f32.gmra.mrb[0].mxu0 %v102
    %v195 = vpop.f32.mrb[0].mxu0
    %v196 = vadd.f32 %v80, %v195
    %v197 = vpop.f32.mrb[0].mxu0
    %198 = vmatprep.mubr.f32.mxu0 0.0
    %199 = vmatmul.mubr.f32.gmra.mrb[0].mxu0 %v105
    %v200 = vpop.f32.mrb[0].mxu0
    %v201 = vadd.f32 %v81, %v200
    %v202 = vpop.f32.mrb[0].mxu0
    %203 = vmatprep.mubr.f32.mxu0 0.0
    %204 = vmatmul.mubr.f32.gmra.mrb[0].mxu0 %v108
    %v205 = vpop.f32.mrb[0].mxu0
    %v206 = vadd.f32 %v82, %v205
    %v207 = vpop.f32.mrb[0].mxu0
    %208 = vmatprep.mubr.f32.mxu0 0.0
    %209 = vmatmul.mubr.f32.gmra.mrb[0].mxu0 %v111
    %v210 = vpop.f32.mrb[0].mxu0
    %v211 = vadd.f32 %v83, %v210
    %v212 = vpop.f32.mrb[0].mxu0
    %213 = vmatprep.mubr.f32.mxu0 0.0
    %214 = vmatmul.mubr.f32.gmra.mrb[0].mxu0 %v114
    %v215 = vpop.f32.mrb[0].mxu0
    %v216 = vadd.f32 %v84, %v215
    %v217 = vpop.f32.mrb[0].mxu0
    %218 = vmatprep.mubr.f32.mxu0 0.0
    %219 = vmatmul.mubr.f32.gmra.mrb[0].mxu0 %v117
    %v220 = vpop.f32.mrb[0].mxu0
    %v221 = vadd.f32 %v85, %v220
    %v222 = vpop.f32.mrb[0].mxu0
    %223 = vdwg.mxu0
    %224 = vmatprep.subr.mxu0 0.0
    %225 = vmatpush1.msra.mxu0 %v186
    %226 = vmatprep.subr.mxu0 0.0
    %227 = vmatpush1.msra.mxu0 %v191
    %228 = vmatprep.subr.mxu0 0.0
    %229 = vmatpush1.msra.mxu0 %v196
    %230 = vmatprep.subr.mxu0 0.0
    %231 = vmatpush1.msra.mxu0 %v201
    %232 = vmatprep.subr.mxu0 0.0
    %233 = vmatpush1.msra.mxu0 %v206
    %234 = vmatprep.subr.mxu0 0.0
    %235 = vmatpush1.msra.mxu0 %v211
    %236 = vmatprep.subr.mxu0 0.0
    %237 = vmatpush1.msra.mxu0 %v216
    %238 = vmatprep.subr.mxu0 0.0
    %239 = vmatpush1.msra.mxu0 %v221
    %240 = vmatprep.subr.mxu0 0.0
    %241 = vmatpush1.msra.mxu0 0.0
    %242 = vmatprep.subr.mxu0 0.0
    %243 = vmatpush1.msra.mxu0 0.0
    %244 = vmatprep.subr.mxu0 0.0
    %245 = vmatpush1.msra.mxu0 0.0
    %246 = vmatprep.subr.mxu0 0.0
    %247 = vmatpush1.msra.mxu0 0.0
    %248 = vmatprep.subr.mxu0 0.0
    %249 = vmatpush1.msra.mxu0 0.0
    %250 = vmatprep.subr.mxu0 0.0
    %251 = vmatpush1.msra.mxu0 0.0
    %252 = vmatprep.subr.mxu0 0.0
    %253 = vmatpush1.msra.mxu0 0.0
    %254 = vmatprep.subr.mxu0 0.0
    %255 = vmatpush1.msra.mxu0 0.0
    %256 = vmatprep.subr.mxu0 0.0
    %257 = vmatpush1.msra.mxu0 0.0
    %258 = vmatprep.subr.mxu0 0.0
    %259 = vmatpush1.msra.mxu0 0.0
    %260 = vmatprep.subr.mxu0 0.0
    %261 = vmatpush1.msra.mxu0 0.0
    %262 = vmatprep.subr.mxu0 0.0
    %263 = vmatpush1.msra.mxu0 0.0
    %264 = vmatprep.subr.mxu0 0.0
    %265 = vmatpush1.msra.mxu0 0.0
    %266 = vmatprep.subr.mxu0 0.0
    %267 = vmatpush1.msra.mxu0 0.0
    %268 = vmatprep.subr.mxu0 0.0
    %269 = vmatpush1.msra.mxu0 0.0
    %270 = vmatprep.subr.mxu0 0.0
    %271 = vmatpush1.msra.mxu0 0.0
    %272 = vmatprep.subr.mxu0 0.0
    %273 = vmatpush1.msra.mxu0 0.0
    %274 = vmatprep.subr.mxu0 0.0
    %275 = vmatpush1.msra.mxu0 0.0
    %276 = vmatprep.subr.mxu0 0.0
    %277 = vmatpush1.msra.mxu0 0.0
    %278 = vmatprep.subr.mxu0 0.0
    %279 = vmatpush1.msra.mxu0 0.0
    %280 = vmatprep.subr.mxu0 0.0
    %281 = vmatpush1.msra.mxu0 0.0
    %282 = vmatprep.subr.mxu0 0.0
    %283 = vmatpush1.msra.mxu0 0.0
    %284 = vmatprep.subr.mxu0 0.0
    %285 = vmatpush1.msra.mxu0 0.0
    %286 = vmatprep.subr.mxu0 0.0
    %287 = vmatpush1.msra.mxu0 0.0
    %288 = vmatprep.mubr.f32.mxu0 0.0
    %289 = vmatmul.mubr.f32.gmra.mrb[0].mxu0 %v96
    %v290 = vpop.f32.mrb[0].mxu0
    %v291 = vadd.f32 %v78, %v290
    %v292 = vpop.f32.mrb[0].mxu0
    %293 = vmatprep.mubr.f32.mxu0 0.0
    %294 = vmatmul.mubr.f32.gmra.mrb[0].mxu0 %v99
    %v295 = vpop.f32.mrb[0].mxu0
    %v296 = vadd.f32 %v79, %v295
    %v297 = vpop.f32.mrb[0].mxu0
    %298 = vmatprep.mubr.f32.mxu0 0.0
    %299 = vmatmul.mubr.f32.gmra.mrb[0].mxu0 %v102
    %v300 = vpop.f32.mrb[0].mxu0
    %v301 = vadd.f32 %v80, %v300
    %v302 = vpop.f32.mrb[0].mxu0
    %303 = vmatprep.mubr.f32.mxu0 0.0
    %304 = vmatmul.mubr.f32.gmra.mrb[0].mxu0 %v105
    %v305 = vpop.f32.mrb[0].mxu0
    %v306 = vadd.f32 %v81, %v305
    %v307 = vpop.f32.mrb[0].mxu0
    %308 = vmatprep.mubr.f32.mxu0 0.0
    %309 = vmatmul.mubr.f32.gmra.mrb[0].mxu0 %v108
    %v310 = vpop.f32.mrb[0].mxu0
    %v311 = vadd.f32 %v82, %v310
    %v312 = vpop.f32.mrb[0].mxu0
    %313 = vmatprep.mubr.f32.mxu0 0.0
    %314 = vmatmul.mubr.f32.gmra.mrb[0].mxu0 %v111
    %v315 = vpop.f32.mrb[0].mxu0
    %v316 = vadd.f32 %v83, %v315
    %v317 = vpop.f32.mrb[0].mxu0
    %318 = vmatprep.mubr.f32.mxu0 0.0
    %319 = vmatmul.mubr.f32.gmra.mrb[0].mxu0 %v114
    %v320 = vpop.f32.mrb[0].mxu0
    %v321 = vadd.f32 %v84, %v320
    %v322 = vpop.f32.mrb[0].mxu0
    %323 = vmatprep.mubr.f32.mxu0 0.0
    %324 = vmatmul.mubr.f32.gmra.mrb[0].mxu0 %v117
    %v325 = vpop.f32.mrb[0].mxu0
    %v326 = vadd.f32 %v85, %v325
    %v327 = vpop.f32.mrb[0].mxu0
    %328 = vdwg.mxu0
    %329 = vmatprep.subr.mxu0 0.0
    %330 = vmatpush1.msra.mxu0 %v291
    %331 = vmatprep.subr.mxu0 0.0
    %332 = vmatpush1.msra.mxu0 %v296
    %333 = vmatprep.subr.mxu0 0.0
    %334 = vmatpush1.msra.mxu0 %v301
    %335 = vmatprep.subr.mxu0 0.0
    %336 = vmatpush1.msra.mxu0 %v306
    %337 = vmatprep.subr.mxu0 0.0
    %338 = vmatpush1.msra.mxu0 %v311
    %339 = vmatprep.subr.mxu0 0.0
    %340 = vmatpush1.msra.mxu0 %v316
    %341 = vmatprep.subr.mxu0 0.0
    %342 = vmatpush1.msra.mxu0 %v321
    %343 = vmatprep.subr.mxu0 0.0
    %344 = vmatpush1.msra.mxu0 %v326
    %345 = vmatprep.subr.mxu0 0.0
    %346 = vmatpush1.msra.mxu0 0.0
    %347 = vmatprep.subr.mxu0 0.0
    %348 = vmatpush1.msra.mxu0 0.0
    %349 = vmatprep.subr.mxu0 0.0
    %350 = vmatpush1.msra.mxu0 0.0
    %351 = vmatprep.subr.mxu0 0.0
    %352 = vmatpush1.msra.mxu0 0.0
    %353 = vmatprep.subr.mxu0 0.0
    %354 = vmatpush1.msra.mxu0 0.0
    %355 = vmatprep.subr.mxu0 0.0
    %356 = vmatpush1.msra.mxu0 0.0
    %357 = vmatprep.subr.mxu0 0.0
    %358 = vmatpush1.msra.mxu0 0.0
    %359 = vmatprep.subr.mxu0 0.0
    %360 = vmatpush1.msra.mxu0 0.0
    %361 = vmatprep.subr.mxu0 0.0
    %362 = vmatpush1.msra.mxu0 0.0
    %363 = vmatprep.subr.mxu0 0.0
    %364 = vmatpush1.msra.mxu0 0.0
    %365 = vmatprep.subr.mxu0 0.0
    %366 = vmatpush1.msra.mxu0 0.0
    %367 = vmatprep.subr.mxu0 0.0
    %368 = vmatpush1.msra.mxu0 0.0
    %369 = vmatprep.subr.mxu0 0.0
    %370 = vmatpush1.msra.mxu0 0.0
    %371 = vmatprep.subr.mxu0 0.0
    %372 = vmatpush1.msra.mxu0 0.0
    %373 = vmatprep.subr.mxu0 0.0
    %374 = vmatpush1.msra.mxu0 0.0
    %375 = vmatprep.subr.mxu0 0.0
    %376 = vmatpush1.msra.mxu0 0.0
    %377 = vmatprep.subr.mxu0 0.0
    %378 = vmatpush1.msra.mxu0 0.0
    %379 = vmatprep.subr.mxu0 0.0
    %380 = vmatpush1.msra.mxu0 0.0
    %381 = vmatprep.subr.mxu0 0.0
    %382 = vmatpush1.msra.mxu0 0.0
    %383 = vmatprep.subr.mxu0 0.0
    %384 = vmatpush1.msra.mxu0 0.0
    %385 = vmatprep.subr.mxu0 0.0
    %386 = vmatpush1.msra.mxu0 0.0
    %387 = vmatprep.subr.mxu0 0.0
    %388 = vmatpush1.msra.mxu0 0.0
    %389 = vmatprep.subr.mxu0 0.0
    %390 = vmatpush1.msra.mxu0 0.0
    %391 = vmatprep.subr.mxu0 0.0
    %392 = vmatpush1.msra.mxu0 0.0
    %393 = vmatprep.mubr.f32.mxu0 0.0
    %394 = vmatmul.mubr.f32.gmra.mrb[0].mxu0 %v96
    %v395 = vpop.f32.mrb[0].mxu0
    %v396 = vadd.f32 %v78, %v395
    %v397 = vpop.f32.mrb[0].mxu0
    %398 = vmatprep.mubr.f32.mxu0 0.0
    %399 = vmatmul.mubr.f32.gmra.mrb[0].mxu0 %v99
    %v400 = vpop.f32.mrb[0].mxu0
    %v401 = vadd.f32 %v79, %v400
    %v402 = vpop.f32.mrb[0].mxu0
    %403 = vmatprep.mubr.f32.mxu0 0.0
    %404 = vmatmul.mubr.f32.gmra.mrb[0].mxu0 %v102
    %v405 = vpop.f32.mrb[0].mxu0
    %v406 = vadd.f32 %v80, %v405
    %v407 = vpop.f32.mrb[0].mxu0
    %408 = vmatprep.mubr.f32.mxu0 0.0
    %409 = vmatmul.mubr.f32.gmra.mrb[0].mxu0 %v105
    %v410 = vpop.f32.mrb[0].mxu0
    %v411 = vadd.f32 %v81, %v410
    %v412 = vpop.f32.mrb[0].mxu0
    %413 = vmatprep.mubr.f32.mxu0 0.0
    %414 = vmatmul.mubr.f32.gmra.mrb[0].mxu0 %v108
    %v415 = vpop.f32.mrb[0].mxu0
    %v416 = vadd.f32 %v82, %v415
    %v417 = vpop.f32.mrb[0].mxu0
    %418 = vmatprep.mubr.f32.mxu0 0.0
    %419 = vmatmul.mubr.f32.gmra.mrb[0].mxu0 %v111
    %v420 = vpop.f32.mrb[0].mxu0
    %v421 = vadd.f32 %v83, %v420
    %v422 = vpop.f32.mrb[0].mxu0
    %423 = vmatprep.mubr.f32.mxu0 0.0
    %424 = vmatmul.mubr.f32.gmra.mrb[0].mxu0 %v114
    %v425 = vpop.f32.mrb[0].mxu0
    %v426 = vadd.f32 %v84, %v425
    %v427 = vpop.f32.mrb[0].mxu0
    %428 = vmatprep.mubr.f32.mxu0 0.0
    %429 = vmatmul.mubr.f32.gmra.mrb[0].mxu0 %v117
    %v430 = vpop.f32.mrb[0].mxu0
    %v431 = vadd.f32 %v85, %v430
    %v432 = vpop.f32.mrb[0].mxu0
    %433 = vdwg.mxu0
    %434 = vmatprep.subr.mxu0 0.0
    %435 = vmatpush1.msra.mxu0 %v396
    %436 = vmatprep.subr.mxu0 0.0
    %437 = vmatpush1.msra.mxu0 %v401
    %438 = vmatprep.subr.mxu0 0.0
    %439 = vmatpush1.msra.mxu0 %v406
    %440 = vmatprep.subr.mxu0 0.0
    %441 = vmatpush1.msra.mxu0 %v411
    %442 = vmatprep.subr.mxu0 0.0
    %443 = vmatpush1.msra.mxu0 %v416
    %444 = vmatprep.subr.mxu0 0.0
    %445 = vmatpush1.msra.mxu0 %v421
    %446 = vmatprep.subr.mxu0 0.0
    %447 = vmatpush1.msra.mxu0 %v426
    %448 = vmatprep.subr.mxu0 0.0
    %449 = vmatpush1.msra.mxu0 %v431
    %450 = vmatprep.subr.mxu0 0.0
    %451 = vmatpush1.msra.mxu0 0.0
    %452 = vmatprep.subr.mxu0 0.0
    %453 = vmatpush1.msra.mxu0 0.0
    %454 = vmatprep.subr.mxu0 0.0
    %455 = vmatpush1.msra.mxu0 0.0
    %456 = vmatprep.subr.mxu0 0.0
    %457 = vmatpush1.msra.mxu0 0.0
    %458 = vmatprep.subr.mxu0 0.0
    %459 = vmatpush1.msra.mxu0 0.0
    %460 = vmatprep.subr.mxu0 0.0
    %461 = vmatpush1.msra.mxu0 0.0
    %462 = vmatprep.subr.mxu0 0.0
    %463 = vmatpush1.msra.mxu0 0.0
    %464 = vmatprep.subr.mxu0 0.0
    %465 = vmatpush1.msra.mxu0 0.0
    %466 = vmatprep.subr.mxu0 0.0
    %467 = vmatpush1.msra.mxu0 0.0
    %468 = vmatprep.subr.mxu0 0.0
    %469 = vmatpush1.msra.mxu0 0.0
    %470 = vmatprep.subr.mxu0 0.0
    %471 = vmatpush1.msra.mxu0 0.0
    %472 = vmatprep.subr.mxu0 0.0
    %473 = vmatpush1.msra.mxu0 0.0
    %474 = vmatprep.subr.mxu0 0.0
    %475 = vmatpush1.msra.mxu0 0.0
    %476 = vmatprep.subr.mxu0 0.0
    %477 = vmatpush1.msra.mxu0 0.0
    %478 = vmatprep.subr.mxu0 0.0
    %479 = vmatpush1.msra.mxu0 0.0
    %480 = vmatprep.subr.mxu0 0.0
    %481 = vmatpush1.msra.mxu0 0.0
    %482 = vmatprep.subr.mxu0 0.0
    %483 = vmatpush1.msra.mxu0 0.0
    %484 = vmatprep.subr.mxu0 0.0
    %485 = vmatpush1.msra.mxu0 0.0
    %486 = vmatprep.subr.mxu0 0.0
    %487 = vmatpush1.msra.mxu0 0.0
    %488 = vmatprep.subr.mxu0 0.0
    %489 = vmatpush1.msra.mxu0 0.0
    %490 = vmatprep.subr.mxu0 0.0
    %491 = vmatpush1.msra.mxu0 0.0
    %492 = vmatprep.subr.mxu0 0.0
    %493 = vmatpush1.msra.mxu0 0.0
    %494 = vmatprep.subr.mxu0 0.0
    %495 = vmatpush1.msra.mxu0 0.0
    %496 = vmatprep.subr.mxu0 0.0
    %497 = vmatpush1.msra.mxu0 0.0
    %498 = vmatprep.mubr.f32.mxu0 0.0
    %499 = vmatmul.mubr.f32.gmra.mrb[0].mxu0 %v96
    %v500 = vpop.f32.mrb[0].mxu0
    %v501 = vadd.f32 %v78, %v500
    %v502 = vpop.f32.mrb[0].mxu0
    %503 = vmatprep.mubr.f32.mxu0 0.0
    %504 = vmatmul.mubr.f32.gmra.mrb[0].mxu0 %v99
    %v505 = vpop.f32.mrb[0].mxu0
    %v506 = vadd.f32 %v79, %v505
    %v507 = vpop.f32.mrb[0].mxu0
    %508 = vmatprep.mubr.f32.mxu0 0.0
    %509 = vmatmul.mubr.f32.gmra.mrb[0].mxu0 %v102
    %v510 = vpop.f32.mrb[0].mxu0
    %v511 = vadd.f32 %v80, %v510
    %v512 = vpop.f32.mrb[0].mxu0
    %513 = vmatprep.mubr.f32.mxu0 0.0
    %514 = vmatmul.mubr.f32.gmra.mrb[0].mxu0 %v105
    %v515 = vpop.f32.mrb[0].mxu0
    %v516 = vadd.f32 %v81, %v515
    %v517 = vpop.f32.mrb[0].mxu0
    %518 = vmatprep.mubr.f32.mxu0 0.0
    %519 = vmatmul.mubr.f32.gmra.mrb[0].mxu0 %v108
    %v520 = vpop.f32.mrb[0].mxu0
    %v521 = vadd.f32 %v82, %v520
    %v522 = vpop.f32.mrb[0].mxu0
    %523 = vmatprep.mubr.f32.mxu0 0.0
    %524 = vmatmul.mubr.f32.gmra.mrb[0].mxu0 %v111
    %v525 = vpop.f32.mrb[0].mxu0
    %v526 = vadd.f32 %v83, %v525
    %v527 = vpop.f32.mrb[0].mxu0
    %528 = vmatprep.mubr.f32.mxu0 0.0
    %529 = vmatmul.mubr.f32.gmra.mrb[0].mxu0 %v114
    %v530 = vpop.f32.mrb[0].mxu0
    %v531 = vadd.f32 %v84, %v530
    %v532 = vpop.f32.mrb[0].mxu0
    %533 = vmatprep.mubr.f32.mxu0 0.0
    %534 = vmatmul.mubr.f32.gmra.mrb[0].mxu0 %v117
    %v535 = vpop.f32.mrb[0].mxu0
    %v536 = vadd.f32 %v85, %v535
    %v537 = vpop.f32.mrb[0].mxu0
    %538 = vdwg.mxu0
    %539 = vst [vmem:[#allocation9] sm:$0xff] %v501
    %540 = vst [vmem:[#allocation9 + $0x8] sm:$0xff] %v506
    %541 = vst [vmem:[#allocation9 + $0x10] sm:$0xff] %v511
    %542 = vst [vmem:[#allocation9 + $0x18] sm:$0xff] %v516
    %543 = vst [vmem:[#allocation9 + $0x20] sm:$0xff] %v521
    %544 = vst [vmem:[#allocation9 + $0x28] sm:$0xff] %v526
    %545 = vst [vmem:[#allocation9 + $0x30] sm:$0xff] %v531
    %546 = vst [vmem:[#allocation9 + $0x38] sm:$0xff] %v536
    // Predicated region
    $region30: #{tpu_custom_call.1} parent=1 // pred_check
      _
    $region31: #{tpu_custom_call.1} parent=1 // pred_check_branch
      %548 = sbr.rel (0) target = $region33
    $region32: #{tpu_custom_call.1} parent=1 // pred_region
      %s550 = ssub.s32 1024, 1024
      %551 = vsyncadd [#allocation5], %s550
      %s552 = sshll.u32 [#allocation9], 4
      %s553 = int_to_ptr.vmem [resolvable:$true] %s552
      %558 = dma.vmem_to_hbm [thread:$0]  %s553, 1024, %s4, [#allocation5], 128, 128, 8
    $region33: #{tpu_custom_call.1} parent=1 // pred_fallthru
      _
    // Predicated region
    $region34: #{tpu_custom_call.1} parent=1 // pred_check
      _
    $region35: #{tpu_custom_call.1} parent=1 // pred_check_branch
      %560 = sbr.rel (0) target = $region37
    $region36: #{tpu_custom_call.1} parent=1 // pred_region
      %561 = dma.done [#allocation5], 1024
    $region37: #{tpu_custom_call.1} parent=1 // pred_fallthru
      _
    %562 = vsyncpa [#allocation4], 1
    %563 = vsyncpa [#allocation7], 1
    %564 = vsyncpa [#allocation5], 1

</llo_original>
